<compile_context>
chip_gen: v6e
topology: v6e:2x2x1
jax: 0.10.0
libtpu: 0.0.40
codegen_flags: <defaults>
</compile_context>

<pallas_src>
import functools
import math

import jax
import jax.numpy as jnp
from jax import lax
from jax.experimental import pallas as pl
from jax.experimental.pallas import tpu as pltpu


def _xent_kernel(x_ref, gt_ref, wl_ref, w_ref, m_sc, s_sc, p_sc,
                 *, pad, T, V, t_blk, v_blk, bf16_fast):
    """prob=False: one grid step = one (batch row, T tile, V tile).

    x_ref  : (t_blk, v_blk) native-dtype logits tile
    gt_ref : (t_blk, 1) int32 targets (resident across the V axis)
    wl_ref : (1, 1) f32 partial  sum_t weight[gt_t] * loss_t  for this (b, t-tile)
    w_ref  : (1, 1) f32 partial  sum_t weight[gt_t]           for this (b, t-tile)
    m_sc/s_sc/p_sc : (t_blk, 1) f32 online-LSE max / exp-sum / picked-logit
    """
    t = pl.program_id(1)
    v = pl.program_id(2)
    nv = pl.num_programs(2)

    # Per-row online-reduction scratch: init at the start of each V sweep.
    @pl.when(v == 0)
    def _():
        m_sc[...] = jnp.full_like(m_sc, -jnp.inf)
        s_sc[...] = jnp.zeros_like(s_sc)
        p_sc[...] = jnp.zeros_like(p_sc)

    x_nat = x_ref[...]                                     # (t_blk, v_blk) native
    gt = gt_ref[...]                                       # (t_blk, 1) int32

    # Static local iota; shift the small operands instead of adding v*v_blk to
    # the whole tile (saves one full-tile VPU add per step).
    lane = lax.broadcasted_iota(jnp.int32, (t_blk, v_blk), 1)
    gt_local = gt - v * v_blk                              # (t_blk, 1)

    x_f32 = x_nat.astype(jnp.float32)                      # needed for exp chain

    # ---- picked logit x[row, gt[row]]: at most one matching lane per row ----
    if bf16_fast:
        # bf16 select (bf16-capable VALU on v6e/v7x) + MXU lane reduction.
        # Exact: single nonzero per row, values already bf16, f32 accumulation.
        sel = jnp.where(lane == gt_local, x_nat, 0)
        ones = jnp.ones((v_blk, 128), dtype=x_nat.dtype)
        p_sc[...] += jnp.dot(sel, ones,
                             preferred_element_type=jnp.float32)[:, 0:1]
    else:
        p_sc[...] += jnp.sum(jnp.where(lane == gt_local, x_f32, 0.0),
                             axis=-1, keepdims=True)

    # ---- online logsumexp across V tiles ----
    if V % v_blk != 0:
        # Edge mask only when V is not tile-divisible (all-true except last tile).
        xm = jnp.where(lane < (V - v * v_blk), x_f32, -jnp.inf)
        tile_max = jnp.max(xm, axis=-1, keepdims=True)
    else:
        xm = x_f32
        if bf16_fast:
            # max in native bf16 (exact when upcast), halves VALU width here.
            tile_max = jnp.max(x_nat, axis=-1, keepdims=True).astype(jnp.float32)
        else:
            tile_max = jnp.max(x_f32, axis=-1, keepdims=True)

    m_new = jnp.maximum(m_sc[...], tile_max)
    s_sc[...] = s_sc[...] * jnp.exp(m_sc[...] - m_new) + jnp.sum(
        jnp.exp(xm - m_new), axis=-1, keepdims=True)
    m_sc[...] = m_new

    # ---- finalize this (b, t-tile) on the last V step ----
    @pl.when(v == nv - 1)
    def _():
        loss = m_sc[...] + jnp.log(s_sc[...]) - p_sc[...]  # (t_blk, 1)
        # word_weight = ones(V), word_weight[pad] = 0  =>  weight = (gt != pad).
        # Rows padded past T (garbage/NaN) are killed by a true select (where).
        if T % t_blk == 0:
            mask = gt != pad
        else:
            row = lax.broadcasted_iota(jnp.int32, (t_blk, 1), 0) + t * t_blk
            mask = jnp.logical_and(row < T, gt != pad)
        wl_ref[...] = jnp.sum(jnp.where(mask, loss, 0.0), axis=0, keepdims=True)
        w_ref[...] = jnp.sum(mask.astype(jnp.float32), axis=0, keepdims=True)


def _nll_picked_kernel(p_ref, gt_ref, wl_ref, w_ref, *, pad, T, t_blk):
    """prob=True: loss only needs x[t, gt[t]] (already gathered on the host side).

    p_ref  : (t_blk, 1) native-dtype picked probabilities
    gt_ref : (t_blk, 1) int32 targets
    wl_ref/w_ref : (1, 1) f32 partial sums for this (b, t-tile)
    """
    t = pl.program_id(1)
    picked = p_ref[...].astype(jnp.float32)
    gt = gt_ref[...]
    loss = -jnp.log(jnp.maximum(picked, 1e-10))            # log(clamp(p,1e-10))
    if T % t_blk == 0:
        mask = gt != pad
    else:
        row = lax.broadcasted_iota(jnp.int32, (t_blk, 1), 0) + t * t_blk
        mask = jnp.logical_and(row < T, gt != pad)
    wl_ref[...] = jnp.sum(jnp.where(mask, loss, 0.0), axis=0, keepdims=True)
    w_ref[...] = jnp.sum(mask.astype(jnp.float32), axis=0, keepdims=True)


def seq_loss(inputs, gts, *, voc_size, pad, prob, keep_batch=False,
             t_tile=256, v_tile=4096):
    """Pallas implementation of SeqLoss.forward.

    inputs: (..., T, V) float array (logits if prob=False, probs if prob=True)
    gts:    (..., T)    int array
    """
    if inputs.shape[0] == 0:
        raise ValueError()
    assert inputs.shape[:-1] == gts.shape
    struct_shape = inputs.shape[:-2]
    T, V = inputs.shape[-2:]
    assert V == voc_size
    B = math.prod(struct_shape) if struct_shape else 1

    # Native dtype stays in HBM (bf16/f16/f32); upcasts happen per tile in-kernel.
    x = inputs.reshape(B, T, V)
    g = gts.astype(jnp.int32).reshape(B, T, 1)

    t_blk = T if T <= t_tile else t_tile      # t_tile is a multiple of 8
    n_t = pl.cdiv(T, t_blk)

    # Per-(b, t-tile) partial sums -> both B and T axes are "parallel"
    # (uses both TensorCores on v7x even at small/odd B).
    out_shape = (jax.ShapeDtypeStruct((B, n_t, 1, 1), jnp.float32),
                 jax.ShapeDtypeStruct((B, n_t, 1, 1), jnp.float32))
    out_specs = [
        pl.BlockSpec((None, None, 1, 1), lambda b, t, *_: (b, t, 0, 0)),
        pl.BlockSpec((None, None, 1, 1), lambda b, t, *_: (b, t, 0, 0)),
    ]

    if prob:
        # Gather path: read B*T picked values instead of streaming B*T*V.
        # TODO(synk): the data-dependent vocab gather itself is a plain-JAX
        # take_along_axis (XLA gather); only the loss/weight reduction is Pallas.
        picked = jnp.take_along_axis(x, g, axis=-1)        # (B, T, 1) native dtype
        kernel = functools.partial(_nll_picked_kernel, pad=pad, T=T, t_blk=t_blk)
        wl4, w4 = pl.pallas_call(
            kernel,
            out_shape=out_shape,
            grid_spec=pltpu.PrefetchScalarGridSpec(
                num_scalar_prefetch=0,
                grid=(B, n_t),
                in_specs=[
                    pl.BlockSpec((None, t_blk, 1), lambda b, t: (b, t, 0)),
                    pl.BlockSpec((None, t_blk, 1), lambda b, t: (b, t, 0)),
                ],
                out_specs=out_specs,
            ),
            compiler_params=pltpu.CompilerParams(
                dimension_semantics=("parallel", "parallel")),
        )(picked, g)
    else:
        v_blk = V if V <= v_tile else v_tile   # v_tile is a multiple of 128
        n_v = pl.cdiv(V, v_blk)
        bf16_fast = x.dtype == jnp.bfloat16    # exact bf16 select/max + MXU pick

        kernel = functools.partial(_xent_kernel, pad=pad, T=T, V=V,
                                   t_blk=t_blk, v_blk=v_blk,
                                   bf16_fast=bf16_fast)

        # Scoped-VMEM budget: double-buffered logits tile + f32 temporaries;
        # >= 32 MiB (covers v5e's 16 MiB default), capped under v7x's 64 MiB.
        tile_bytes = t_blk * v_blk * x.dtype.itemsize
        vmem_limit = int(min(max(2 * tile_bytes + 4 * t_blk * v_blk * 4
                                 + (4 << 20), 32 << 20), 56 << 20))

        wl4, w4 = pl.pallas_call(
            kernel,
            out_shape=out_shape,
            grid_spec=pltpu.PrefetchScalarGridSpec(
                num_scalar_prefetch=0,
                grid=(B, n_t, n_v),
                in_specs=[
                    pl.BlockSpec((None, t_blk, v_blk), lambda b, t, v: (b, t, v)),
                    pl.BlockSpec((None, t_blk, 1), lambda b, t, v: (b, t, 0)),
                ],
                out_specs=out_specs,
                scratch_shapes=[
                    pltpu.VMEM((t_blk, 1), jnp.float32),   # running max
                    pltpu.VMEM((t_blk, 1), jnp.float32),   # running exp-sum
                    pltpu.VMEM((t_blk, 1), jnp.float32),   # picked logit
                ],
            ),
            compiler_params=pltpu.CompilerParams(
                dimension_semantics=("parallel", "parallel", "arbitrary"),
                vmem_limit_bytes=vmem_limit),
        )(x, g)

    wl = wl4[:, :, 0, 0].sum(axis=1)   # (B,) sum_t weight*loss per batch row
    w = w4[:, :, 0, 0].sum(axis=1)     # (B,) sum_t weight per batch row

    if keep_batch:
        # reduction='none' then .sum(-1)  ==  per-row sum of weight*loss
        return wl.reshape(struct_shape)
    # PyTorch weighted-mean reduction over all tokens.
    # NOTE: if every token is PAD this is 0/0 = NaN, matching F.cross_entropy.
    return jnp.sum(wl) / jnp.sum(w)


def _ref_seq_loss(inputs, gts, *, pad, prob, keep_batch):
    """Pure-JAX reference mirroring F.cross_entropy / F.nll_loss semantics."""
    struct_shape = inputs.shape[:-2]
    T, V = inputs.shape[-2:]
    x = inputs.reshape(-1, V).astype(jnp.float32)
    g = gts.reshape(-1).astype(jnp.int32)
    if prob:
        logp = jnp.log(jnp.clip(x, 1e-10, None))
    else:
        logp = jax.nn.log_softmax(x, axis=-1)
    nll = -jnp.take_along_axis(logp, g[:, None], axis=-1)[:, 0]
    w = (g != pad).astype(jnp.float32)
    if keep_batch:
        return (w * nll).reshape(struct_shape + (T,)).sum(-1)
    return jnp.sum(w * nll) / jnp.sum(w)


if __name__ == "__main__":
    # deterministic module parameters (no checkpoint loading)
    VOC_SIZE, PAD, BOS, EOS, UNK = 200, 0, 1, 2, 3
    B, T = 2, 12

    key = jax.random.PRNGKey(0)
    k_logits, k_gts = jax.random.split(key)
    logits = jax.random.normal(k_logits, (B, T, VOC_SIZE), dtype=jnp.float32)
    gts = jax.random.randint(k_gts, (B, T), 0, VOC_SIZE, dtype=jnp.int32)
    # sprinkle some PAD tokens so the word_weight masking is exercised
    gts = gts.at[0, -2:].set(PAD).at[1, -1].set(PAD)
    probs = jax.nn.softmax(logits, axis=-1)

    cases = [
        # f32 inputs, single-tile path (block covers full T and V)
        ("f32/full", logits, probs, {}),
        # f32 inputs, forced small tiles: online LSE + T/V edge masks
        ("f32/tiled", logits, probs, dict(t_tile=8, v_tile=128)),
        # bf16 inputs: native-bf16 select/max + MXU picked-value reduction
        ("bf16/full", logits.astype(jnp.bfloat16), probs.astype(jnp.bfloat16), {}),
        # bf16 + small tiles: bf16 fast path with V/T edge masking
        ("bf16/tiled", logits.astype(jnp.bfloat16), probs.astype(jnp.bfloat16),
         dict(t_tile=8, v_tile=128)),
    ]

    ok = True
    for name, lg, pr, tile_kw in cases:
        for prob_flag, inp in ((False, lg), (True, pr)):
            for keep_batch in (False, True):
                out = seq_loss(inp, gts, voc_size=VOC_SIZE, pad=PAD,
                               prob=prob_flag, keep_batch=keep_batch, **tile_kw)
                out = jax.block_until_ready(out)
                ref = _ref_seq_loss(inp, gts, pad=PAD, prob=prob_flag,
                                    keep_batch=keep_batch)
                ref = jax.block_until_ready(ref)
                if not jnp.allclose(out, ref, atol=1e-4, rtol=1e-4):
                    ok = False
                    print("MISMATCH", name, prob_flag, keep_batch, out, ref)

    if ok:
        print("KERNEL_OK")
</pallas_src>

<mosaic_0001>
module attributes {stable_mosaic.version = 11 : i64} {
  func.func @_xent_kernel(%arg0: i32, %arg1: i32, %arg2: i32, %arg3: memref<1x12x200xf32, #tpu.memory_space<vmem>>, %arg4: memref<1x12x1xi32, #tpu.memory_space<vmem>>, %arg5: memref<1x1x1x1xf32, #tpu.memory_space<vmem>>, %arg6: memref<1x1x1x1xf32, #tpu.memory_space<vmem>>, %arg7: memref<12x1xf32, #tpu.memory_space<vmem>>, %arg8: memref<12x1xf32, #tpu.memory_space<vmem>>, %arg9: memref<12x1xf32, #tpu.memory_space<vmem>>) attributes {dimension_semantics = [#tpu.dimension_semantics<parallel>, #tpu.dimension_semantics<parallel>, #tpu.dimension_semantics<arbitrary>], iteration_bounds = array<i64: 2, 1, 1>, scalar_prefetch = 0 : i64, scratch_operands = 3 : i64, tpu.core_type = #tpu.core_type<tc>, window_params = [{transform_indices = @transform_0, window_bounds = array<i64: 1, 12, 200>}, {transform_indices = @transform_1, window_bounds = array<i64: 1, 12, 1>}, {transform_indices = @transform_2, window_bounds = array<i64: 1, 1, 1, 1>}, {transform_indices = @transform_3, window_bounds = array<i64: 1, 1, 1, 1>}]} {
    %c0_i32 = arith.constant 0 : i32
    %0 = arith.cmpi eq, %arg2, %c0_i32 : i32
    %1 = arith.extui %0 : i1 to i32
    %c0_i32_0 = arith.constant 0 : i32
    %2 = arith.cmpi ne, %1, %c0_i32_0 : i32
    scf.if %2 {
      %cst_25 = arith.constant 0xFF800000 : f32
      %40 = vector.broadcast %cst_25 : f32 to vector<12x1xf32>
      %c0_26 = arith.constant 0 : index
      %c0_27 = arith.constant 0 : index
      %41 = vector.load %arg7[%c0_26, %c0_27] : memref<12x1xf32, #tpu.memory_space<vmem>>, vector<12x1xf32>
      tpu.vector_store %arg7[%c0_26, %c0_27], %40 {strides = array<i32>} : memref<12x1xf32, #tpu.memory_space<vmem>>, vector<12x1xf32>,
      %cst_28 = arith.constant 0.000000e+00 : f32
      %42 = vector.broadcast %cst_28 : f32 to vector<12x1xf32>
      %c0_29 = arith.constant 0 : index
      %c0_30 = arith.constant 0 : index
      %43 = vector.load %arg8[%c0_29, %c0_30] : memref<12x1xf32, #tpu.memory_space<vmem>>, vector<12x1xf32>
      tpu.vector_store %arg8[%c0_29, %c0_30], %42 {strides = array<i32>} : memref<12x1xf32, #tpu.memory_space<vmem>>, vector<12x1xf32>,
      %cst_31 = arith.constant 0.000000e+00 : f32
      %44 = vector.broadcast %cst_31 : f32 to vector<12x1xf32>
      %c0_32 = arith.constant 0 : index
      %c0_33 = arith.constant 0 : index
      %45 = vector.load %arg9[%c0_32, %c0_33] : memref<12x1xf32, #tpu.memory_space<vmem>>, vector<12x1xf32>
      tpu.vector_store %arg9[%c0_32, %c0_33], %44 {strides = array<i32>} : memref<12x1xf32, #tpu.memory_space<vmem>>, vector<12x1xf32>,
    } else {
    }
    %c0 = arith.constant 0 : index
    %c0_1 = arith.constant 0 : index
    %c0_2 = arith.constant 0 : index
    %3 = vector.load %arg3[%c0, %c0_1, %c0_2] : memref<1x12x200xf32, #tpu.memory_space<vmem>>, vector<1x12x200xf32>
    %4 = vector.shape_cast %3 : vector<1x12x200xf32> to vector<12x200xf32>
    %c0_3 = arith.constant 0 : index
    %c0_4 = arith.constant 0 : index
    %c0_5 = arith.constant 0 : index
    %5 = vector.load %arg4[%c0_3, %c0_4, %c0_5] : memref<1x12x1xi32, #tpu.memory_space<vmem>>, vector<1x12x1xi32>
    %6 = vector.shape_cast %5 : vector<1x12x1xi32> to vector<12x1xi32>
    %7 = tpu.iota {dimensions = array<i32: 1>} : vector<12x200xi32>
    %c200_i32 = arith.constant 200 : i32
    %8 = arith.muli %arg2, %c200_i32 : i32
    %9 = vector.broadcast %8 : i32 to vector<12x1xi32>
    %10 = arith.subi %6, %9 : vector<12x1xi32>
    %c0_6 = arith.constant 0 : index
    %c0_7 = arith.constant 0 : index
    %11 = vector.load %arg9[%c0_6, %c0_7] : memref<12x1xf32, #tpu.memory_space<vmem>>, vector<12x1xf32>
    %12 = vector.broadcast %10 : vector<12x1xi32> to vector<12x200xi32>
    %13 = arith.cmpi eq, %7, %12 : vector<12x200xi32>
    %cst = arith.constant 0.000000e+00 : f32
    %14 = vector.broadcast %cst : f32 to vector<12x200xf32>
    %15 = arith.select %13, %4, %14 : vector<12x200xi1>, vector<12x200xf32>
    %cst_8 = arith.constant dense<0.000000e+00> : vector<12xf32>
    %16 = vector.multi_reduction <add>, %15, %cst_8 [1] : vector<12x200xf32> to vector<12xf32>
    %17 = vector.shape_cast %16 : vector<12xf32> to vector<12x1xf32>
    %18 = arith.addf %11, %17 : vector<12x1xf32>
    %c0_9 = arith.constant 0 : index
    %c0_10 = arith.constant 0 : index
    %19 = vector.load %arg9[%c0_9, %c0_10] : memref<12x1xf32, #tpu.memory_space<vmem>>, vector<12x1xf32>
    tpu.vector_store %arg9[%c0_9, %c0_10], %18 {strides = array<i32>} : memref<12x1xf32, #tpu.memory_space<vmem>>, vector<12x1xf32>,
    %cst_11 = arith.constant dense<0xFF800000> : vector<12xf32>
    %20 = vector.multi_reduction <maximumf>, %4, %cst_11 [1] : vector<12x200xf32> to vector<12xf32>
    %21 = vector.shape_cast %20 : vector<12xf32> to vector<12x1xf32>
    %c0_12 = arith.constant 0 : index
    %c0_13 = arith.constant 0 : index
    %22 = vector.load %arg7[%c0_12, %c0_13] : memref<12x1xf32, #tpu.memory_space<vmem>>, vector<12x1xf32>
    %23 = arith.maximumf %22, %21 : vector<12x1xf32>
    %c0_14 = arith.constant 0 : index
    %c0_15 = arith.constant 0 : index
    %24 = vector.load %arg8[%c0_14, %c0_15] : memref<12x1xf32, #tpu.memory_space<vmem>>, vector<12x1xf32>
    %c0_16 = arith.constant 0 : index
    %c0_17 = arith.constant 0 : index
    %25 = vector.load %arg7[%c0_16, %c0_17] : memref<12x1xf32, #tpu.memory_space<vmem>>, vector<12x1xf32>
    %26 = arith.subf %25, %23 : vector<12x1xf32>
    %27 = math.exp %26 : vector<12x1xf32>
    %28 = arith.mulf %24, %27 : vector<12x1xf32>
    %29 = vector.broadcast %23 : vector<12x1xf32> to vector<12x200xf32>
    %30 = arith.subf %4, %29 : vector<12x200xf32>
    %31 = math.exp %30 : vector<12x200xf32>
    %cst_18 = arith.constant dense<0.000000e+00> : vector<12xf32>
    %32 = vector.multi_reduction <add>, %31, %cst_18 [1] : vector<12x200xf32> to vector<12xf32>
    %33 = vector.shape_cast %32 : vector<12xf32> to vector<12x1xf32>
    %34 = arith.addf %28, %33 : vector<12x1xf32>
    %c0_19 = arith.constant 0 : index
    %c0_20 = arith.constant 0 : index
    %35 = vector.load %arg8[%c0_19, %c0_20] : memref<12x1xf32, #tpu.memory_space<vmem>>, vector<12x1xf32>
    tpu.vector_store %arg8[%c0_19, %c0_20], %34 {strides = array<i32>} : memref<12x1xf32, #tpu.memory_space<vmem>>, vector<12x1xf32>,
    %c0_21 = arith.constant 0 : index
    %c0_22 = arith.constant 0 : index
    %36 = vector.load %arg7[%c0_21, %c0_22] : memref<12x1xf32, #tpu.memory_space<vmem>>, vector<12x1xf32>
    tpu.vector_store %arg7[%c0_21, %c0_22], %23 {strides = array<i32>} : memref<12x1xf32, #tpu.memory_space<vmem>>, vector<12x1xf32>,
    %c0_i32_23 = arith.constant 0 : i32
    %37 = arith.cmpi eq, %arg2, %c0_i32_23 : i32
    %38 = arith.extui %37 : i1 to i32
    %c0_i32_24 = arith.constant 0 : i32
    %39 = arith.cmpi ne, %38, %c0_i32_24 : i32
    scf.if %39 {
      %c0_25 = arith.constant 0 : index
      %c0_26 = arith.constant 0 : index
      %40 = vector.load %arg7[%c0_25, %c0_26] : memref<12x1xf32, #tpu.memory_space<vmem>>, vector<12x1xf32>
      %c0_27 = arith.constant 0 : index
      %c0_28 = arith.constant 0 : index
      %41 = vector.load %arg8[%c0_27, %c0_28] : memref<12x1xf32, #tpu.memory_space<vmem>>, vector<12x1xf32>
      %42 = math.log %41 : vector<12x1xf32>
      %43 = arith.addf %40, %42 : vector<12x1xf32>
      %c0_29 = arith.constant 0 : index
      %c0_30 = arith.constant 0 : index
      %44 = vector.load %arg9[%c0_29, %c0_30] : memref<12x1xf32, #tpu.memory_space<vmem>>, vector<12x1xf32>
      %45 = arith.subf %43, %44 : vector<12x1xf32>
      %c0_i32_31 = arith.constant 0 : i32
      %46 = vector.broadcast %c0_i32_31 : i32 to vector<12x1xi32>
      %47 = arith.cmpi ne, %6, %46 : vector<12x1xi32>
      %cst_32 = arith.constant 0.000000e+00 : f32
      %48 = vector.broadcast %cst_32 : f32 to vector<12x1xf32>
      %49 = arith.select %47, %45, %48 : vector<12x1xi1>, vector<12x1xf32>
      %cst_33 = arith.constant dense<0.000000e+00> : vector<1xf32>
      %50 = vector.multi_reduction <add>, %49, %cst_33 [0] : vector<12x1xf32> to vector<1xf32>
      %51 = vector.shape_cast %50 : vector<1xf32> to vector<1x1xf32>
      %c0_34 = arith.constant 0 : index
      %c0_35 = arith.constant 0 : index
      %c0_36 = arith.constant 0 : index
      %c0_37 = arith.constant 0 : index
      %52 = vector.load %arg5[%c0_34, %c0_35, %c0_36, %c0_37] : memref<1x1x1x1xf32, #tpu.memory_space<vmem>>, vector<1x1x1x1xf32>
      %53 = vector.shape_cast %52 : vector<1x1x1x1xf32> to vector<1x1xf32>
      %54 = vector.shape_cast %51 : vector<1x1xf32> to vector<1x1x1x1xf32>
      tpu.vector_store %arg5[%c0_34, %c0_35, %c0_36, %c0_37], %54 {strides = array<i32>} : memref<1x1x1x1xf32, #tpu.memory_space<vmem>>, vector<1x1x1x1xf32>,
      %55 = arith.extui %47 : vector<12x1xi1> to vector<12x1xi32>
      %56 = arith.sitofp %55 : vector<12x1xi32> to vector<12x1xf32>
      %cst_38 = arith.constant dense<0.000000e+00> : vector<1xf32>
      %57 = vector.multi_reduction <add>, %56, %cst_38 [0] : vector<12x1xf32> to vector<1xf32>
      %58 = vector.shape_cast %57 : vector<1xf32> to vector<1x1xf32>
      %c0_39 = arith.constant 0 : index
      %c0_40 = arith.constant 0 : index
      %c0_41 = arith.constant 0 : index
      %c0_42 = arith.constant 0 : index
      %59 = vector.load %arg6[%c0_39, %c0_40, %c0_41, %c0_42] : memref<1x1x1x1xf32, #tpu.memory_space<vmem>>, vector<1x1x1x1xf32>
      %60 = vector.shape_cast %59 : vector<1x1x1x1xf32> to vector<1x1xf32>
      %61 = vector.shape_cast %58 : vector<1x1xf32> to vector<1x1x1x1xf32>
      tpu.vector_store %arg6[%c0_39, %c0_40, %c0_41, %c0_42], %61 {strides = array<i32>} : memref<1x1x1x1xf32, #tpu.memory_space<vmem>>, vector<1x1x1x1xf32>,
    } else {
    }
    return
  }
  func.func @transform_0(%arg0: i32, %arg1: i32, %arg2: i32) -> (i32, i32, i32) {
    %c0_i32 = arith.constant 0 : i32
    return %arg0, %arg1, %arg2 : i32, i32, i32
  }
  func.func @transform_1(%arg0: i32, %arg1: i32, %arg2: i32) -> (i32, i32, i32) {
    %c0_i32 = arith.constant 0 : i32
    %c0_i32_0 = arith.constant 0 : i32
    return %arg0, %arg1, %c0_i32 : i32, i32, i32
  }
  func.func @transform_2(%arg0: i32, %arg1: i32, %arg2: i32) -> (i32, i32, i32, i32) {
    %c0_i32 = arith.constant 0 : i32
    %c0_i32_0 = arith.constant 0 : i32
    %c0_i32_1 = arith.constant 0 : i32
    return %arg0, %arg1, %c0_i32, %c0_i32_0 : i32, i32, i32, i32
  }
  func.func @transform_3(%arg0: i32, %arg1: i32, %arg2: i32) -> (i32, i32, i32, i32) {
    %c0_i32 = arith.constant 0 : i32
    %c0_i32_0 = arith.constant 0 : i32
    %c0_i32_1 = arith.constant 0 : i32
    return %arg0, %arg1, %c0_i32, %c0_i32_0 : i32, i32, i32, i32
  }
}

</mosaic_0001>

<llo_original>
// kernel: tpu_custom_call.1
$region0: #{tpu_custom_call.1}
  #allocation0 [shape = 'u32[]', space=smem, size = 0x4, offset = 0x4, fixed_abs, tag = 'smem constant byte address 0x4 - core index']
  #allocation1 [shape = 'u32[144,128]{1,0:T(1,128)}', space=vmem, size = 0x12000, scoped, tag = 'internal scratch']
  #allocation2 [shape = 'f32[12,1]{1,0:T(8,128)}', space=vmem, size = 0x2000, scoped, tag = 'scratch operand']
  #allocation3 [shape = 'f32[12,1]{1,0:T(8,128)}', space=vmem, size = 0x2000, scoped, tag = 'scratch operand']
  #allocation4 [shape = 'f32[12,1]{1,0:T(8,128)}', space=vmem, size = 0x2000, scoped, tag = 'scratch operand']
  %s0 = inlined_call_operand.vmem [shape: f32[2,12,200], index: 0, kind: input, shape index: {}]
  %s1 = inlined_call_operand.vmem [shape: s32[2,12,1], index: 1, kind: input, shape index: {}]
  %s2 = inlined_call_operand.vmem [shape: f32[2,1,1,1], index: 2, kind: output, shape index: {0}]
  %s3 = inlined_call_operand.vmem [shape: f32[2,1,1,1], index: 3, kind: output, shape index: {1}]
  %4 = xla_tuple %s2, %s3
  %s5 = sld [smem:[#allocation0]]
  $region57: #{tpu_custom_call.1} parent=0
    _
  %s7 = ssub.s32 1, %s5
  %s8 = scalar_select 0, %s7, %s5
  loop: start=0, step=1, limit=4
  $region2: #{tpu_custom_call.1} parent=0 // loop_pre_header
    _
  $region3: #{tpu_custom_call.1} parent=0 // loop_header
    %s10 = sphi 0, %s14
    %p11 = scmp.ge.s32.totalorder %s10, 4
    %s17 = sphi 0, %s36
    %s18 = sphi 0, %s32
    %s19 = sphi 0, %s28
    %s20 = sphi 0, %s17
    %s21 = sphi 0, %s18
    %s22 = sphi 0, %s19
    %s23 = sphi 0, %s20
    %s24 = sphi 0, %s21
    %s25 = sphi 0, %s22
    %s43 = sphi 0, %s45
    %s46 = sphi 0, %s43
    %s47 = sphi 0, %s46
    %s63 = sphi 0, %s47
    %s71 = sphi 0, %s73
    %s74 = sphi 0, %s71
    %s75 = sphi 0, %s74
    %s91 = sphi 0, %s75
    %s99 = sphi 0, %s101
    %s102 = sphi 0, %s99
    %s103 = sphi 0, %s102
    %s119 = sphi 0, %s103
    %s127 = sphi 0, %s129
    %s130 = sphi 0, %s127
    %s131 = sphi 0, %s130
    %s147 = sphi 0, %s131
  $region4: #{tpu_custom_call.1} parent=0 // loop_header_branch
    %13 = sbr.rel (%p11) target = $region8
  $region5: #{tpu_custom_call.1} parent=0 // loop_body
    %s15 = ssub.s32 %s10, 1
    %s16 = ssub.s32 %s10, 2
    %s26 = sadd.s32 1, %s19
    %p27 = scmp.ge.s32.totalorder %s26, 1
    %s28 = scalar_select %p27, 0, %s26
    %s29 = sadd.s32 1, %s18
    %s30 = scalar_select %p27, %s29, %s18
    %p31 = scmp.ge.s32.totalorder %s30, 1
    %s32 = scalar_select %p31, 0, %s30
    %s33 = sadd.s32 1, %s17
    %s34 = scalar_select %p31, %s33, %s17
    %p35 = scmp.ge.s32.totalorder %s34, 2
    %s36 = scalar_select %p35, 0, %s34
    %s37 = ssub.s32 %s17, %s36
    %s38 = ssub.s32 %s18, %s32
    %s39 = sor.u32 %s37, %s38
    %s40 = ssub.s32 %s19, %s28
    %s41 = sor.u32 %s39, %s40
    %p42 = scmp.eq.s32.totalorder %s41, 0
    %s44 = sadd.s32 %s43, 1
    %s45 = scalar_select %p42, %s43, %s44
    %p48 = pneg %p42
    %p49 = scmp.eq.s32.totalorder %s10, 1
    %p50 = por %p48, %p49
    %p51 = scmp.ne.s32.totalorder %s43, %s46
    %p52 = scmp.eq.s32.totalorder %s10, 0
    %p53 = por %p51, %p52
    %p54 = scmp.ne.s32.totalorder %s43, %s46
    %p55 = scmp.eq.s32.totalorder %s15, 1
    %p56 = por %p54, %p55
    %p57 = scmp.ne.s32.totalorder %s46, %s47
    %p58 = scmp.eq.s32.totalorder %s15, 0
    %p59 = por %p57, %p58
    %p60 = scmp.ne.s32.totalorder %s46, %s47
    %p61 = scmp.eq.s32.totalorder %s16, 1
    %p62 = por %p60, %p61
    %p64 = scmp.ne.s32.totalorder %s47, %s63
    %p65 = scmp.eq.s32.totalorder %s16, 0
    %p66 = por %p64, %p65
    %s67 = ssub.s32 %s17, %s36
    %s68 = ssub.s32 %s18, %s32
    %s69 = sor.u32 %s67, %s68
    %p70 = scmp.eq.s32.totalorder %s69, 0
    %s72 = sadd.s32 %s71, 1
    %s73 = scalar_select %p70, %s71, %s72
    %p76 = pneg %p70
    %p77 = scmp.eq.s32.totalorder %s10, 1
    %p78 = por %p76, %p77
    %p79 = scmp.ne.s32.totalorder %s71, %s74
    %p80 = scmp.eq.s32.totalorder %s10, 0
    %p81 = por %p79, %p80
    %p82 = scmp.ne.s32.totalorder %s71, %s74
    %p83 = scmp.eq.s32.totalorder %s15, 1
    %p84 = por %p82, %p83
    %p85 = scmp.ne.s32.totalorder %s74, %s75
    %p86 = scmp.eq.s32.totalorder %s15, 0
    %p87 = por %p85, %p86
    %p88 = scmp.ne.s32.totalorder %s74, %s75
    %p89 = scmp.eq.s32.totalorder %s16, 1
    %p90 = por %p88, %p89
    %p92 = scmp.ne.s32.totalorder %s75, %s91
    %p93 = scmp.eq.s32.totalorder %s16, 0
    %p94 = por %p92, %p93
    %s95 = ssub.s32 %s17, %s36
    %s96 = ssub.s32 %s18, %s32
    %s97 = sor.u32 %s95, %s96
    %p98 = scmp.eq.s32.totalorder %s97, 0
    %s100 = sadd.s32 %s99, 1
    %s101 = scalar_select %p98, %s99, %s100
    %p104 = pneg %p98
    %p105 = scmp.eq.s32.totalorder %s10, 1
    %p106 = por %p104, %p105
    %p107 = scmp.ne.s32.totalorder %s99, %s102
    %p108 = scmp.eq.s32.totalorder %s10, 0
    %p109 = por %p107, %p108
    %p110 = scmp.ne.s32.totalorder %s99, %s102
    %p111 = scmp.eq.s32.totalorder %s15, 1
    %p112 = por %p110, %p111
    %p113 = scmp.ne.s32.totalorder %s102, %s103
    %p114 = scmp.eq.s32.totalorder %s15, 0
    %p115 = por %p113, %p114
    %p116 = scmp.ne.s32.totalorder %s102, %s103
    %p117 = scmp.eq.s32.totalorder %s16, 1
    %p118 = por %p116, %p117
    %p120 = scmp.ne.s32.totalorder %s103, %s119
    %p121 = scmp.eq.s32.totalorder %s16, 0
    %p122 = por %p120, %p121
    %s123 = ssub.s32 %s17, %s36
    %s124 = ssub.s32 %s18, %s32
    %s125 = sor.u32 %s123, %s124
    %p126 = scmp.eq.s32.totalorder %s125, 0
    %s128 = sadd.s32 %s127, 1
    %s129 = scalar_select %p126, %s127, %s128
    %p132 = pneg %p126
    %p133 = scmp.eq.s32.totalorder %s10, 1
    %p134 = por %p132, %p133
    %p135 = scmp.ne.s32.totalorder %s127, %s130
    %p136 = scmp.eq.s32.totalorder %s10, 0
    %p137 = por %p135, %p136
    %p138 = scmp.ne.s32.totalorder %s127, %s130
    %p139 = scmp.eq.s32.totalorder %s15, 1
    %p140 = por %p138, %p139
    %p141 = scmp.ne.s32.totalorder %s130, %s131
    %p142 = scmp.eq.s32.totalorder %s15, 0
    %p143 = por %p141, %p142
    %p144 = scmp.ne.s32.totalorder %s130, %s131
    %p145 = scmp.eq.s32.totalorder %s16, 1
    %p146 = por %p144, %p145
    %p148 = scmp.ne.s32.totalorder %s131, %s147
    %p149 = scmp.eq.s32.totalorder %s16, 0
    %p150 = por %p148, %p149
    %p151 = scmp.le.s32.totalorder 1, %s10
    %p152 = scmp.lt.s32.totalorder %s10, 3
    %p153 = pnand %p151, %p152
    %p154 = pneg %p153
    // Predicated region
    $region9: #{tpu_custom_call.1} parent=5 // pred_check
      _
    $region10: #{tpu_custom_call.1} parent=5 // pred_check_branch
      %156 = sbr.rel (%p153) target = $region12
    $region11: #{tpu_custom_call.1} parent=5 // pred_region
      %s157 = ssub.s32 %s10, 1
    $region12: #{tpu_custom_call.1} parent=5 // pred_fallthru
      _
    %p158 = scmp.lt.s32.totalorder %s10, 2
    // Predicated region
    $region13: #{tpu_custom_call.1} parent=5 // pred_check
      %p159 = pneg %p158
    $region14: #{tpu_custom_call.1} parent=5 // pred_check_branch
      %161 = sbr.rel (%p159) target = $region16
    $region15: #{tpu_custom_call.1} parent=5 // pred_region
      // Predicated region
      $region17: #{tpu_custom_call.1} parent=15 // pred_check
        %p162 = pneg %p53
      $region18: #{tpu_custom_call.1} parent=15 // pred_check_branch
        %164 = sbr.rel (%p162) target = $region20
      $region19: #{tpu_custom_call.1} parent=15 // pred_region
        %s165 = smul.u32 2, %s18
        %s166 = smul.u32 2, %s19
        %p167 = scmp.lt.s32.totalorder %s17, 1
        %s168 = scalar_select %p167, %s17, 1
        %p169 = scmp.lt.s32.totalorder %s165, 1
        %s170 = scalar_select %p169, %s165, 1
        %p171 = scmp.lt.s32.totalorder %s166, 1
        %s172 = scalar_select %p171, %s166, 1
        %s173 = smul.addr %s170, 2
        %s174 = sadd.s32 %s172, %s173
        %s175 = smul.addr %s168, 4
        %s176 = sadd.s32 %s174, %s175
        %s177 = smul.addr %s176, 8
        %s178 = scalar_lea.vmem %s0, %s177
        %s179 = smul.u32 2, %s18
        %s180 = smul.u32 2, %s19
      $region20: #{tpu_custom_call.1} parent=15 // pred_fallthru
        _
      // Predicated region
      $region21: #{tpu_custom_call.1} parent=15 // pred_check
        %p181 = pneg %p81
      $region22: #{tpu_custom_call.1} parent=15 // pred_check_branch
        %183 = sbr.rel (%p181) target = $region24
      $region23: #{tpu_custom_call.1} parent=15 // pred_region
        %s184 = smul.u32 2, %s18
        %p185 = scmp.lt.s32.totalorder %s17, 1
        %s186 = scalar_select %p185, %s17, 1
        %p187 = scmp.lt.s32.totalorder %s184, 1
        %s188 = scalar_select %p187, %s184, 1
        %s189 = smul.addr %s186, 2
        %s190 = sadd.s32 %s188, %s189
        %s191 = smul.addr %s190, 8
        %s192 = scalar_lea.vmem %s1, %s191
        %s193 = smul.u32 2, %s18
      $region24: #{tpu_custom_call.1} parent=15 // pred_fallthru
        _
    $region16: #{tpu_custom_call.1} parent=5 // pred_fallthru
      _
    %p194 = scmp.le.s32.totalorder 1, %s10
    %p195 = scmp.lt.s32.totalorder %s10, 3
    %p196 = pnand %p194, %p195
    %p197 = pneg %p196
    // Predicated region
    $region25: #{tpu_custom_call.1} parent=5 // pred_check
      _
    $region26: #{tpu_custom_call.1} parent=5 // pred_check_branch
      %199 = sbr.rel (%p196) target = $region28
    $region27: #{tpu_custom_call.1} parent=5 // pred_region
      %s200 = ssub.s32 %s10, 1
      %s201 = smul.u32 2, %s21
      %s202 = smul.u32 2, %s22
      %p203 = scmp.lt.s32.totalorder %s20, 1
      %s204 = scalar_select %p203, %s20, 1
      %p205 = scmp.lt.s32.totalorder %s201, 1
      %s206 = scalar_select %p205, %s201, 1
      %p207 = scmp.lt.s32.totalorder %s202, 1
      %s208 = scalar_select %p207, %s202, 1
      %s209 = smul.addr %s206, 2
      %s210 = sadd.s32 %s208, %s209
      %s211 = smul.addr %s204, 4
      %s212 = sadd.s32 %s210, %s211
      %s213 = smul.addr %s212, 8
      %s214 = scalar_lea.vmem %s0, %s213
      %p215 = pneg %p59
      %p216 = pneg %p56
      %s217 = smul.u32 2, %s21
      %p218 = scmp.lt.s32.totalorder %s20, 1
      %s219 = scalar_select %p218, %s20, 1
      %p220 = scmp.lt.s32.totalorder %s217, 1
      %s221 = scalar_select %p220, %s217, 1
      %s222 = smul.addr %s219, 2
      %s223 = sadd.s32 %s221, %s222
      %s224 = smul.addr %s223, 8
      %s225 = scalar_lea.vmem %s1, %s224
      %p226 = pneg %p87
      %p227 = pneg %p84
      %p228 = pneg %p115
      %p229 = pneg %p112
      %p230 = scmp.lt.s32.totalorder %s20, 1
      %s231 = scalar_select %p230, %s20, 1
      %p232 = scmp.lt.s32.totalorder %s21, 0
      %s233 = scalar_select %p232, %s21, 0
      %s234 = sadd.s32 %s233, %s231
      %s235 = scalar_lea.vmem %s2, %s234
      %p236 = pneg %p143
      %p237 = pneg %p140
      %p238 = scmp.lt.s32.totalorder %s20, 1
      %s239 = scalar_select %p238, %s20, 1
      %p240 = scmp.lt.s32.totalorder %s21, 0
      %s241 = scalar_select %p240, %s21, 0
      %s242 = sadd.s32 %s241, %s239
      %s243 = scalar_lea.vmem %s3, %s242
      %s244 = smul.u32 2, %s21
      %s245 = smul.u32 2, %s22
      %p246 = scmp.lt.s32.totalorder %s20, 1
      %s247 = scalar_select %p246, %s20, 1
      %p248 = scmp.lt.s32.totalorder %s244, 1
      %s249 = scalar_select %p248, %s244, 1
      %p250 = scmp.lt.s32.totalorder %s245, 1
      %s251 = scalar_select %p250, %s245, 1
      %s252 = smul.addr %s249, 2
      %s253 = sadd.s32 %s251, %s252
      %s254 = smul.addr %s247, 4
      %s255 = sadd.s32 %s253, %s254
      %s256 = smul.addr %s255, 8
      %s257 = scalar_lea.vmem %s0, %s256
      %s258 = smul.u32 2, %s21
      %s259 = smul.u32 2, %s22
      %s260 = smul.u32 2, %s21
      %p261 = scmp.lt.s32.totalorder %s20, 1
      %s262 = scalar_select %p261, %s20, 1
      %p263 = scmp.lt.s32.totalorder %s260, 1
      %s264 = scalar_select %p263, %s260, 1
      %s265 = smul.addr %s262, 2
      %s266 = sadd.s32 %s264, %s265
      %s267 = smul.addr %s266, 8
      %s268 = scalar_lea.vmem %s1, %s267
      %s269 = smul.u32 2, %s21
      %p270 = scmp.lt.s32.totalorder %s20, 1
      %s271 = scalar_select %p270, %s20, 1
      %p272 = scmp.lt.s32.totalorder %s21, 0
      %s273 = scalar_select %p272, %s21, 0
      %s274 = sadd.s32 %s273, %s271
      %s275 = scalar_lea.vmem %s2, %s274
      %p276 = scmp.lt.s32.totalorder %s20, 1
      %s277 = scalar_select %p276, %s20, 1
      %p278 = scmp.lt.s32.totalorder %s21, 0
      %s279 = scalar_select %p278, %s21, 0
      %s280 = sadd.s32 %s279, %s277
      %s281 = scalar_lea.vmem %s3, %s280
      %p282 = scmp.eq.s32.totalorder %s22, 0
      // Predicated region
      $region29: #{tpu_custom_call.1} parent=27 // pred_check
        %p283 = pneg %p282
      $region30: #{tpu_custom_call.1} parent=27 // pred_check_branch
        %285 = sbr.rel (%p283) target = $region32
      $region31: #{tpu_custom_call.1} parent=27 // pred_region
        %vm286 = vcmask 7168
        %287 = vst.msk [vmem:[#allocation2] sm:$0xff] %vm286, -inf
        %vm288 = vcmask 3072
        %289 = vst.msk [vmem:[#allocation2 + $0x8] sm:$0xf] %vm288, -inf
        %290 = vst.msk [vmem:[#allocation3] sm:$0xff] %vm286, 0.0
        %291 = vst.msk [vmem:[#allocation3 + $0x8] sm:$0xf] %vm288, 0.0
        %292 = vst.msk [vmem:[#allocation4] sm:$0xff] %vm286, 0.0
        %293 = vst.msk [vmem:[#allocation4 + $0x8] sm:$0xf] %vm288, 0.0
      $region32: #{tpu_custom_call.1} parent=27 // pred_fallthru
        _
      %v294 = vld [vmem:[%s257] sm:$0xff]
      %v295 = vld [vmem:[%s257 + $0x8] sm:$0xff]
      %v296 = vld [vmem:[%s257 + $0x10] sm:$0xf]
      %v297 = vld [vmem:[%s257 + $0x18] sm:$0xf]
      %v298 = vld [vmem:[%s268] sm:$0xff]
      %v299 = vld [vmem:[%s268 + $0x8] sm:$0xf]
      %v300 = vlaneseq
      %v301 = vand.u32 %v300, 127
      %v302 = vadd.s32 %v301, 128
      %s303 = smul.u32 %s22, 200
      %v304 = vstv %s303
      %v305 = vsub.s32 %v298, %v304
      %v306 = vsub.s32 %v299, %v304
      %v307 = vld [vmem:[#allocation4] sm:$0xff]
      %v308 = vld [vmem:[#allocation4 + $0x8] sm:$0xf]
      %309 = vset.pattern.permute.xlu0 0
      %310 = vperm.xlu0 %309, %v305
      %v311 = vpop.permute.xlu0 %310
      %312 = vset.pattern.permute.xlu0 0
      %313 = vperm.xlu0 %312, %v306
      %v314 = vpop.permute.xlu0 %313
      %vm315 = vcmp.eq.s32.totalorder %v301, %v311
      %vm316 = vcmp.eq.s32.totalorder %v302, %v311
      %vm317 = vcmp.eq.s32.totalorder %v301, %v314
      %vm318 = vcmp.eq.s32.totalorder %v302, %v314
      %v319 = vsel %vm315, %v294, 0.0
      %v320 = vsel %vm316, %v295, 0.0
      %v321 = vsel %vm317, %v296, 0.0
      %v322 = vsel %vm318, %v297, 0.0
      %vm323 = vcmask 588800
      %v324 = vsel %vm323, %v320, 0.0
      %v325 = vadd.f32 %v319, %v324
      %326 = vadd.xlane.f32.xlu0 %v325
      %v327 = vpop.xlane.xlu0 %326
      %vm328 = vcmask 1043456
      %v329 = vsel %vm328, %v321, 0.0
      %vm330 = vcmask 584704
      %v331 = vsel %vm330, %v322, 0.0
      %v332 = vadd.f32 %v329, %v331
      %333 = vadd.xlane.f32.xlu0 %v332
      %v334 = vpop.xlane.xlu0 %333
      %v335 = vadd.f32 %v307, %v327
      %v336 = vadd.f32 %v308, %v334
      %vm337 = vcmask 7168
      %338 = vst.msk [vmem:[#allocation4] sm:$0xff] %vm337, %v335
      %vm339 = vcmask 3072
      %340 = vst.msk [vmem:[#allocation4 + $0x8] sm:$0xf] %vm339, %v336
      %v341 = vsel %vm323, %v295, -inf
      %v342 = vmax.f32 %v294, %v341
      %343 = vmax.xlane.f32.xlu0 %v342
      %v344 = vpop.xlane.xlu0 %343
      %v345 = vsel %vm328, %v296, -inf
      %v346 = vsel %vm330, %v297, -inf
      %v347 = vmax.f32 %v345, %v346
      %348 = vmax.xlane.f32.xlu0 %v347
      %v349 = vpop.xlane.xlu0 %348
      %v350 = vld [vmem:[#allocation2] sm:$0xff]
      %v351 = vld [vmem:[#allocation2 + $0x8] sm:$0xf]
      %v352 = vmax.f32 %v350, %v344
      %v353 = vmax.f32 %v351, %v349
      %v354 = vld [vmem:[#allocation3] sm:$0xff]
      %v355 = vld [vmem:[#allocation3 + $0x8] sm:$0xf]
      %v356 = vsub.f32 %v350, %v352
      %v357 = vsub.f32 %v351, %v353
      %v358 = vmul.f32 %v356, 1.442695
      %v359 = vpow.pop %v358
      %v360 = vmul.f32 %v357, 1.442695
      %v361 = vpow.pop %v360
      %v362 = vmul.f32 %v354, %v359
      %v363 = vmul.f32 %v355, %v361
      %365 = vset.pattern.permute.xlu0 0
      %366 = vperm.xlu0 %365, %v352
      %v367 = vpop.permute.xlu0 %366
      %370 = vset.pattern.permute.xlu0 0
      %371 = vperm.xlu0 %370, %v353
      %v372 = vpop.permute.xlu0 %371
      %v374 = vsub.f32 %v294, %v367
      %v375 = vsub.f32 %v295, %v367
      %v376 = vsub.f32 %v296, %v372
      %v377 = vsub.f32 %v297, %v372
      %v378 = vmul.f32 %v374, 1.442695
      %v379 = vpow.pop %v378
      %v380 = vmul.f32 %v375, 1.442695
      %v381 = vpow.pop %v380
      %v382 = vmul.f32 %v376, 1.442695
      %v383 = vpow.pop %v382
      %v384 = vmul.f32 %v377, 1.442695
      %v385 = vpow.pop %v384
      %v386 = vsel %vm323, %v381, 0.0
      %v387 = vadd.f32 %v379, %v386
      %388 = vadd.xlane.f32.xlu0 %v387
      %v389 = vpop.xlane.xlu0 %388
      %v390 = vsel %vm328, %v383, 0.0
      %v391 = vsel %vm330, %v385, 0.0
      %v392 = vadd.f32 %v390, %v391
      %393 = vadd.xlane.f32.xlu0 %v392
      %v394 = vpop.xlane.xlu0 %393
      %v395 = vadd.f32 %v362, %v389
      %v396 = vadd.f32 %v363, %v394
      %397 = vst.msk [vmem:[#allocation3] sm:$0xff] %vm337, %v395
      %398 = vst.msk [vmem:[#allocation3 + $0x8] sm:$0xf] %vm339, %v396
      %399 = vst.msk [vmem:[#allocation2] sm:$0xff] %vm337, %v352
      %400 = vst.msk [vmem:[#allocation2 + $0x8] sm:$0xf] %vm339, %v353
      // Predicated region
      $region33: #{tpu_custom_call.1} parent=27 // pred_check
        %p401 = pneg %p282
      $region34: #{tpu_custom_call.1} parent=27 // pred_check_branch
        %403 = sbr.rel (%p401) target = $region36
      $region35: #{tpu_custom_call.1} parent=27 // pred_region
        %v404 = vld [vmem:[#allocation2] sm:$0xff]
        %v405 = vld [vmem:[#allocation2 + $0x8] sm:$0xf]
        %v406 = vld [vmem:[#allocation3] sm:$0xff]
        %v407 = vld [vmem:[#allocation3 + $0x8] sm:$0xf]
        %v408 = vlog2.pop %v406
        %v409 = vmul.f32 %v408, 0.6931472
        %v410 = vlog2.pop %v407
        %v411 = vmul.f32 %v410, 0.6931472
        %v412 = vadd.f32 %v404, %v409
        %v413 = vadd.f32 %v405, %v411
        %v414 = vld [vmem:[#allocation4] sm:$0xff]
        %v415 = vld [vmem:[#allocation4 + $0x8] sm:$0xf]
        %v416 = vsub.f32 %v412, %v414
        %v417 = vsub.f32 %v413, %v415
        %vm418 = vcmp.ne.s32.totalorder %v298, 0
        %vm419 = vcmp.ne.s32.totalorder %v299, 0
        %v420 = vsel %vm418, %v416, 0.0
        %v421 = vsel %vm419, %v417, 0.0
        %v422 = vsel %vm337, %v420, 0.0
        %v423 = vsel %vm339, %v421, 0.0
        %v424 = vadd.f32 %v422, %v423
        %v425 = vrot.slane %v424, 4
        %v426 = vadd.f32 %v424, %v425
        %v427 = vrot.slane %v426, 2
        %v428 = vadd.f32 %v426, %v427
        %v429 = vrot.slane %v428, 1
        %v430 = vadd.f32 %v428, %v429
        %vm431 = vcmask 0
        %432 = vst.msk [vmem:[%s275] sm:$0x1] %vm431, %v430
        %v433 = vsel %vm418, 1, 0
        %v434 = vsel %vm419, 1, 0
        %v435 = vcvt.s32.f32 %v433
        %v436 = vcvt.s32.f32 %v434
        %v437 = vsel %vm337, %v435, 0.0
        %v438 = vsel %vm339, %v436, 0.0
        %v439 = vadd.f32 %v437, %v438
        %v440 = vrot.slane %v439, 4
        %v441 = vadd.f32 %v439, %v440
        %v442 = vrot.slane %v441, 2
        %v443 = vadd.f32 %v441, %v442
        %v444 = vrot.slane %v443, 1
        %v445 = vadd.f32 %v443, %v444
        %446 = vst.msk [vmem:[%s281] sm:$0x1] %vm431, %v445
      $region36: #{tpu_custom_call.1} parent=27 // pred_fallthru
        _
      %p447 = scmp.lt.s32.totalorder %s20, 1
      %s448 = scalar_select %p447, %s20, 1
      %p449 = scmp.lt.s32.totalorder %s21, 0
      %s450 = scalar_select %p449, %s21, 0
      %s451 = sadd.s32 %s450, %s448
      %s452 = scalar_lea.vmem %s2, %s451
      %p453 = scmp.lt.s32.totalorder %s20, 1
      %s454 = scalar_select %p453, %s20, 1
      %p455 = scmp.lt.s32.totalorder %s21, 0
      %s456 = scalar_select %p455, %s21, 0
      %s457 = sadd.s32 %s456, %s454
      %s458 = scalar_lea.vmem %s3, %s457
      // Predicated region
      $region37: #{tpu_custom_call.1} parent=27 // pred_check
        %p459 = pneg %p112
      $region38: #{tpu_custom_call.1} parent=27 // pred_check_branch
        %461 = sbr.rel (%p459) target = $region40
      $region39: #{tpu_custom_call.1} parent=27 // pred_region
        _
      $region40: #{tpu_custom_call.1} parent=27 // pred_fallthru
        _
      // Predicated region
      $region41: #{tpu_custom_call.1} parent=27 // pred_check
        %p462 = pneg %p140
      $region42: #{tpu_custom_call.1} parent=27 // pred_check_branch
        %464 = sbr.rel (%p462) target = $region44
      $region43: #{tpu_custom_call.1} parent=27 // pred_region
        _
      $region44: #{tpu_custom_call.1} parent=27 // pred_fallthru
        _
    $region28: #{tpu_custom_call.1} parent=5 // pred_fallthru
      _
    %p465 = scmp.le.s32.totalorder 2, %s10
    // Predicated region
    $region45: #{tpu_custom_call.1} parent=5 // pred_check
      %p466 = pneg %p465
    $region46: #{tpu_custom_call.1} parent=5 // pred_check_branch
      %468 = sbr.rel (%p466) target = $region48
    $region47: #{tpu_custom_call.1} parent=5 // pred_region
      %s469 = ssub.s32 %s10, 2
      // Predicated region
      $region49: #{tpu_custom_call.1} parent=47 // pred_check
        %p470 = pneg %p118
      $region50: #{tpu_custom_call.1} parent=47 // pred_check_branch
        %472 = sbr.rel (%p470) target = $region52
      $region51: #{tpu_custom_call.1} parent=47 // pred_region
        %p473 = scmp.lt.s32.totalorder %s23, 1
        %s474 = scalar_select %p473, %s23, 1
        %p475 = scmp.lt.s32.totalorder %s24, 0
        %s476 = scalar_select %p475, %s24, 0
        %s477 = sadd.s32 %s476, %s474
        %s478 = scalar_lea.vmem %s2, %s477
      $region52: #{tpu_custom_call.1} parent=47 // pred_fallthru
        _
      // Predicated region
      $region53: #{tpu_custom_call.1} parent=47 // pred_check
        %p479 = pneg %p146
      $region54: #{tpu_custom_call.1} parent=47 // pred_check_branch
        %481 = sbr.rel (%p479) target = $region56
      $region55: #{tpu_custom_call.1} parent=47 // pred_region
        %p482 = scmp.lt.s32.totalorder %s23, 1
        %s483 = scalar_select %p482, %s23, 1
        %p484 = scmp.lt.s32.totalorder %s24, 0
        %s485 = scalar_select %p484, %s24, 0
        %s486 = sadd.s32 %s485, %s483
        %s487 = scalar_lea.vmem %s3, %s486
      $region56: #{tpu_custom_call.1} parent=47 // pred_fallthru
        _
    $region48: #{tpu_custom_call.1} parent=5 // pred_fallthru
      _
  $region6: #{tpu_custom_call.1} parent=0 // loop_footer
    %s14 = sadd.s32 1, %s10
  $region7: #{tpu_custom_call.1} parent=0 // loop_footer_branch
    %9 = sbr.rel target = $region3
  $region8: #{tpu_custom_call.1} parent=0 // loop_exit
    _

</llo_original>
